<compile_context>
chip_gen: v7x
topology: tpu7x:2x2x1
jax: 0.10.0
libtpu: 0.0.40
codegen_flags: <defaults>
</compile_context>

<pallas_src>
import numpy as np
import jax
import jax.numpy as jnp
from jax.experimental import pallas as pl
from jax.experimental.pallas import tpu as pltpu


# ----------------------------------------------------------------------------
# Parameter construction (mirrors PositionalEncoder.__init__ exactly)
# ----------------------------------------------------------------------------
def _terms(dim, min_wavelength, max_wavelength):
    """Per-coordinate sin/cos wavelength terms, identical to the PyTorch module."""
    n_sin = int(dim / 2)
    n_cos = dim - n_sin
    if min_wavelength:
        base = min_wavelength / (2 * np.pi)
        scale = max_wavelength / min_wavelength
    else:
        base = 1.0
        scale = max_wavelength / (2 * np.pi)
    sin_term = (base * scale ** (np.arange(0, n_sin, dtype=np.float64) / (n_sin - 1))).astype(np.float32)
    cos_term = (base * scale ** (np.arange(0, n_cos, dtype=np.float64) / (n_cos - 1))).astype(np.float32)
    return sin_term, cos_term


def make_encoder_tables(dim_coords, wavelength_bounds=None):
    """Build the fused weight table W and dim_model.

    W : (n_dims + 1, dm_pad) float32
        rows 0 .. n_dims-1 : one-hot coordinate selector scaled by 1/term
        row  n_dims        : phase offset (0 for sin features, pi/2 for cos features)
    dm_pad is dim_model rounded up to a multiple of 128 (lane-dense, unmasked
    output stores); padded feature columns are all-zero -> sin(0)=0 and are sliced
    off in the wrapper (a no-op when dim_model is already a multiple of 128).
    """
    n_dims = len(dim_coords)
    dim_model = int(sum(dim_coords))
    dm_pad = ((dim_model + 127) // 128) * 128

    W = np.zeros((n_dims + 1, dm_pad), dtype=np.float32)
    col = 0
    for idx, dim in enumerate(dim_coords):
        # Same divide-by-zero hazard as the PyTorch original for dim < 4 — be explicit.
        assert dim >= 4, "each per-coordinate dim must be >= 4 (n_sin-1 / n_cos-1 divisor)"
        if wavelength_bounds:
            min_wl, max_wl = wavelength_bounds[idx]
        else:
            min_wl, max_wl = 0.001, 10000.0
        n_sin = int(dim / 2)
        sin_term, cos_term = _terms(dim, min_wl, max_wl)
        term = np.concatenate([sin_term, cos_term]).astype(np.float64)
        W[idx, col:col + dim] = (1.0 / term).astype(np.float32)       # folded reciprocal
        W[n_dims, col + n_sin:col + dim] = np.float32(np.pi / 2)      # cos -> sin(p + pi/2)
        col += dim

    return jnp.asarray(W), dim_model


# ----------------------------------------------------------------------------
# Pallas kernel
# ----------------------------------------------------------------------------
def coord_encode_kernel(x_ref, w_ref, o_ref):
    # x_ref: (TM, C1)  coordinates for TM flattened positions, with a trailing
    #                  ones column (C1 = n_dims + 1)
    # w_ref: (C1, DM)  fused table: onehot * (1/term) rows + offset row
    # o_ref: (TM, DM)
    #
    # Entire phase computation (coordinate gather, 1/term scaling, sin/cos offset)
    # rides the otherwise-idle MXU.  precision=HIGHEST keeps the f32 mantissa of x
    # intact across the MXU f32-emulation path on all generations.
    phase = jnp.dot(x_ref[...].astype(jnp.float32), w_ref[...],
                    preferred_element_type=jnp.float32,
                    precision=jax.lax.Precision.HIGHEST)
    # Single trig call per output element.  NOTE: on Mosaic this expands to a VPU
    # range-reduction + polynomial (~10-20 VALU ops/elem), not one EUP op — dump
    # the bundle (pl.lower_as_mlir / bundles_to_text) before tuning further.
    o_ref[...] = jnp.sin(phase).astype(o_ref.dtype)


# ----------------------------------------------------------------------------
# Wrapper
# ----------------------------------------------------------------------------
def _round_up(v, m):
    return ((v + m - 1) // m) * m


def coordinate_encode(x, w_table, dim_model, *, tm_max=1024,
                      out_dtype=jnp.bfloat16,
                      vmem_buffer_budget=20 * (1 << 20)):
    """x: (B, N, n_dims) -> (B, N, dim_model).

    out_dtype defaults to bfloat16: the output write dominates HBM traffic
    (rows * dm_pad bytes vs ~16 B/row of input), so bf16 halves writeback on the
    bandwidth-poorest chips and is neutral where the kernel is VALU-bound.
    """
    B, N, C = x.shape
    C1, dm_pad = w_table.shape
    assert C1 == C + 1
    out_dtype = jnp.dtype(out_dtype)
    rows = B * N

    xf = x.reshape(rows, C).astype(jnp.float32)
    # Ones column drives the offset row of W (tiny: rows * 4 bytes extra).
    xa = jnp.concatenate([xf, jnp.ones((rows, 1), jnp.float32)], axis=1)

    # Row tile:
    #  * at least 8 grid steps so double-buffering reaches steady state
    #    (>= 4 steps per v7x TensorCore),
    #  * capped by a VMEM budget: per step the double-buffered output is
    #    2*tm*dm_pad*out_itemsize bytes and the lane-padded (tm, C1) x block is
    #    2*tm*128*4 bytes.  20 MiB of buffers stays well inside the 32 MiB scoped
    #    VMEM limit on every generation (v7x physical VMEM is only 64 MiB).
    per_row = 2 * (dm_pad * out_dtype.itemsize + 128 * 4)
    tm_budget = max(8, (vmem_buffer_budget // per_row) // 8 * 8)
    tm_cap = min(tm_max, tm_budget)
    tm = max(8, min(tm_cap, _round_up(pl.cdiv(rows, 8), 8)))
    grid_len = pl.cdiv(rows, tm)  # ragged last block is masked by Pallas (no pad/slice)
    # Best-effort: keep the number of grid steps even so both v7x TCs get equal work.
    if grid_len > 1 and grid_len % 2 == 1:
        tm_even = max(8, _round_up(pl.cdiv(rows, grid_len + 1), 8))
        if pl.cdiv(rows, tm_even) % 2 == 0:
            tm = tm_even
            grid_len = pl.cdiv(rows, tm)

    cost = pl.CostEstimate(
        flops=2 * rows * C1 * dm_pad,
        transcendentals=rows * dm_pad,
        bytes_accessed=(rows * C1 * 4
                        + rows * dm_pad * out_dtype.itemsize
                        + C1 * dm_pad * 4),
    )

    out = pl.pallas_call(
        coord_encode_kernel,
        out_shape=jax.ShapeDtypeStruct((rows, dm_pad), out_dtype),
        grid_spec=pltpu.PrefetchScalarGridSpec(
            num_scalar_prefetch=0,
            grid=(grid_len,),
            in_specs=[
                pl.BlockSpec((tm, C1), lambda i: (i, 0)),
                pl.BlockSpec((C1, dm_pad), lambda i: (0, 0)),   # resident constant table
            ],
            out_specs=pl.BlockSpec((tm, dm_pad), lambda i: (i, 0)),
        ),
        compiler_params=pltpu.CompilerParams(
            dimension_semantics=("parallel",),
            vmem_limit_bytes=32 * 1024 * 1024,
        ),
        cost_estimate=cost,
    )(xa, w_table)

    if dm_pad != dim_model:
        # TODO(synk): on v5e, benchmark a masked-tail-store (rows, dim_model) output
        # against this pad+slice (the slice is an extra HBM pass) for non-lane-aligned
        # dim_model; keep the padded path on v7x where stores are hot and HBM is cheap.
        out = out[:, :dim_model]
    return out.reshape(B, N, dim_model)


# ----------------------------------------------------------------------------
# Pure-JAX reference (mirrors the PyTorch forward exactly)
# ----------------------------------------------------------------------------
def coordinate_encode_ref(x, dim_coords, wavelength_bounds=None):
    embeddings = []
    for idx, dim in enumerate(dim_coords):
        if wavelength_bounds:
            min_wl, max_wl = wavelength_bounds[idx]
        else:
            min_wl, max_wl = 0.001, 10000.0
        sin_term, cos_term = _terms(dim, min_wl, max_wl)
        xd = x[:, :, idx:idx + 1]                       # (B, N, 1)
        embeddings.append(jnp.concatenate(
            [jnp.sin(xd / jnp.asarray(sin_term)), jnp.cos(xd / jnp.asarray(cos_term))], axis=-1))
    return jnp.concatenate(embeddings, axis=2)


# ----------------------------------------------------------------------------
if __name__ == "__main__":
    # 3 coordinates, dim_coords sums to dim_model=128 (already lane-aligned).
    dim_coords = (64, 32, 32)
    dim_model = sum(dim_coords)
    # Keep minimum wavelengths >= 1 so fp32 phases stay moderate; at very large
    # phases fp32 argument reduction dominates and a bitwise comparison of
    # sin(p+pi/2) vs cos(p) is meaningless for ANY implementation.
    wavelength_bounds = [(1.0, 10000.0), (1.0, 1000.0), (5.0, 5000.0)]
    B, N, C = 2, 64, len(dim_coords)

    key = jax.random.PRNGKey(0)
    X = jax.random.uniform(key, (B, N, C), dtype=jnp.float32, minval=0.0, maxval=100.0)

    w_table, dm = make_encoder_tables(dim_coords, wavelength_bounds)
    ref = coordinate_encode_ref(X, dim_coords, wavelength_bounds)

    # f32 output path: strict numerical check against the PyTorch-equivalent reference.
    # With |phase| <= ~6e2: HIGHEST-precision MXU fold + the pi/2 offset each add a
    # few ulps of the phase (~1e-4 absolute) — 2e-3 leaves a comfortable margin.
    out_f32 = jax.block_until_ready(
        coordinate_encode(X, w_table, dm, out_dtype=jnp.float32))
    assert out_f32.shape == (B, N, dim_model), out_f32.shape
    err_f32 = float(jnp.max(jnp.abs(out_f32 - ref)))
    assert err_f32 < 2e-3, err_f32

    # Default bf16 output path (bandwidth-optimal on v5e): looser check (bf16 has
    # ~2^-9 relative precision on values in [-1, 1]).
    out_bf16 = jax.block_until_ready(coordinate_encode(X, w_table, dm))
    assert out_bf16.shape == (B, N, dim_model), out_bf16.shape
    err_bf16 = float(jnp.max(jnp.abs(out_bf16.astype(jnp.float32) - ref)))
    assert err_bf16 < 2e-2, err_bf16

    print("KERNEL_OK")
</pallas_src>

<mosaic_0001>
module attributes {stable_mosaic.version = 11 : i64} {
  func.func @coord_encode_kernel(%arg0: i32, %arg1: memref<16x4xf32, #tpu.memory_space<vmem>>, %arg2: memref<4x128xf32, #tpu.memory_space<vmem>>, %arg3: memref<16x128xf32, #tpu.memory_space<vmem>>) attributes {dimension_semantics = [#tpu.dimension_semantics<parallel>], iteration_bounds = array<i64: 8>, scalar_prefetch = 0 : i64, scratch_operands = 0 : i64, tpu.core_type = #tpu.core_type<tc>, window_params = [{transform_indices = @transform_0, window_bounds = array<i64: 16, 4>}, {pipeline_mode = #tpu.pipeline_mode<synchronous>, transform_indices = @transform_1, window_bounds = array<i64: 4, 128>}, {transform_indices = @transform_2, window_bounds = array<i64: 16, 128>}]} {
    %c0 = arith.constant 0 : index
    %c0_0 = arith.constant 0 : index
    %0 = vector.load %arg1[%c0, %c0_0] : memref<16x4xf32, #tpu.memory_space<vmem>>, vector<16x4xf32>
    %c0_1 = arith.constant 0 : index
    %c0_2 = arith.constant 0 : index
    %1 = vector.load %arg2[%c0_1, %c0_2] : memref<4x128xf32, #tpu.memory_space<vmem>>, vector<4x128xf32>
    %cst = arith.constant dense<0.000000e+00> : vector<16x128xf32>
    %2 = tpu.matmul %0, %1, %cst {dimension_numbers = #tpu.dot_dimension_numbers<[1], [0], [0], [1], [0, 0, 1, 1], [], []>, precision = #tpu.contract_precision<fp32>} : vector<16x4xf32>, vector<4x128xf32>, vector<16x128xf32> -> vector<16x128xf32>
    %3 = math.sin %2 : vector<16x128xf32>
    %c0_3 = arith.constant 0 : index
    %c0_4 = arith.constant 0 : index
    %4 = vector.load %arg3[%c0_3, %c0_4] : memref<16x128xf32, #tpu.memory_space<vmem>>, vector<16x128xf32>
    tpu.vector_store %arg3[%c0_3, %c0_4], %3 {strides = array<i32>} : memref<16x128xf32, #tpu.memory_space<vmem>>, vector<16x128xf32>,
    return
  }
  func.func @transform_0(%arg0: i32) -> (i32, i32) {
    %c0_i32 = arith.constant 0 : i32
    %c0_i32_0 = arith.constant 0 : i32
    return %arg0, %c0_i32 : i32, i32
  }
  func.func @transform_1(%arg0: i32) -> (i32, i32) {
    %c0_i32 = arith.constant 0 : i32
    %c0_i32_0 = arith.constant 0 : i32
    %c0_i32_1 = arith.constant 0 : i32
    return %c0_i32, %c0_i32_0 : i32, i32
  }
  func.func @transform_2(%arg0: i32) -> (i32, i32) {
    %c0_i32 = arith.constant 0 : i32
    %c0_i32_0 = arith.constant 0 : i32
    return %arg0, %c0_i32 : i32, i32
  }
}

</mosaic_0001>

<llo_original>
// kernel: tpu_custom_call.1
$region0: #{tpu_custom_call.1}
  #allocation0 [shape = 'u32[]', space=smem, size = 0x4, offset = 0x4, fixed_abs, tag = 'smem constant byte address 0x4 - core index']
  #allocation1 [shape = 'u32[144,128]{1,0:T(1,128)}', space=vmem, size = 0x12000, scoped, tag = 'internal scratch']
  %s0 = inlined_call_operand.vmem [shape: f32[128,4], index: 0, kind: input, shape index: {}]
  %s1 = inlined_call_operand.vmem [shape: f32[4,128], index: 1, kind: input, shape index: {}]
  %s2 = inlined_call_operand.hbm [shape: f32[128,128], index: 2, kind: output, shape index: {}]
  %s3 = sld [smem:[#allocation0]]
  $region41: #{tpu_custom_call.1} parent=0
    _
  %s5 = ssub.s32 1, %s3
  %s6 = scalar_select 0, %s5, %s3
  $region1: #{tpu_custom_call.1} parent=0
    #allocation2 [shape = 'u8[16384]{0}', space=vmem, size = 0x4000, scoped, tag = 'output window, operand 0']
    #allocation3 [shape = 's32[2]{0}', space=sflag, size = 0x8, scoped, tag = 'scoped memory for tpu_custom_call.1']
    %7 = vsyncpa [#allocation3], 0
    %s8 = scalar_lea.sflag [#allocation3], 1
    %9 = vsyncpa %s8, 0
    loop: start=0, step=1, limit=10
    $region2: #{tpu_custom_call.1} parent=1 // loop_pre_header
      _
    $region3: #{tpu_custom_call.1} parent=1 // loop_header
      %s11 = sphi 0, %s15
      %p12 = scmp.ge.s32.totalorder %s11, 10
      %s21 = sphi 0, %s23
      %s24 = sphi 0, %s21
      %s25 = sphi 0, %s24
      %s41 = sphi 0, %s25
      %s45 = sphi 0, %s45
      %s47 = sphi 0, %s45
      %s48 = sphi 0, %s47
      %s62 = sphi 0, %s48
      %s68 = sphi 0, %s70
      %s71 = sphi 0, %s68
      %s72 = sphi 0, %s71
      %s88 = sphi 0, %s72
    $region4: #{tpu_custom_call.1} parent=1 // loop_header_branch
      %14 = sbr.rel (%p12) target = $region8
    $region5: #{tpu_custom_call.1} parent=1 // loop_body
      %s16 = ssub.s32 %s11, 1
      %s17 = ssub.s32 %s11, 2
      %s18 = sadd.s32 %s11, 1
      %s19 = ssub.s32 %s11, %s18
      %p20 = scmp.eq.s32.totalorder %s19, 0
      %s22 = sadd.s32 %s21, 1
      %s23 = scalar_select %p20, %s21, %s22
      %p26 = pneg %p20
      %p27 = scmp.eq.s32.totalorder %s11, 7
      %p28 = por %p26, %p27
      %p29 = scmp.ne.s32.totalorder %s21, %s24
      %p30 = scmp.eq.s32.totalorder %s11, 0
      %p31 = por %p29, %p30
      %p32 = scmp.ne.s32.totalorder %s21, %s24
      %p33 = scmp.eq.s32.totalorder %s16, 7
      %p34 = por %p32, %p33
      %p35 = scmp.ne.s32.totalorder %s24, %s25
      %p36 = scmp.eq.s32.totalorder %s16, 0
      %p37 = por %p35, %p36
      %p38 = scmp.ne.s32.totalorder %s24, %s25
      %p39 = scmp.eq.s32.totalorder %s17, 7
      %p40 = por %p38, %p39
      %p42 = scmp.ne.s32.totalorder %s25, %s41
      %p43 = scmp.eq.s32.totalorder %s17, 0
      %p44 = por %p42, %p43
      %s46 = sadd.s32 %s45, 1
      %p49 = scmp.eq.s32.totalorder %s11, 7
      %p50 = scmp.ne.s32.totalorder %s45, %s47
      %p51 = scmp.eq.s32.totalorder %s11, 0
      %p52 = por %p50, %p51
      %p53 = scmp.ne.s32.totalorder %s45, %s47
      %p54 = scmp.eq.s32.totalorder %s16, 7
      %p55 = por %p53, %p54
      %p56 = scmp.ne.s32.totalorder %s47, %s48
      %p57 = scmp.eq.s32.totalorder %s16, 0
      %p58 = por %p56, %p57
      %p59 = scmp.ne.s32.totalorder %s47, %s48
      %p60 = scmp.eq.s32.totalorder %s17, 7
      %p61 = por %p59, %p60
      %p63 = scmp.ne.s32.totalorder %s48, %s62
      %p64 = scmp.eq.s32.totalorder %s17, 0
      %p65 = por %p63, %p64
      %s66 = ssub.s32 %s11, %s18
      %p67 = scmp.eq.s32.totalorder %s66, 0
      %s69 = sadd.s32 %s68, 1
      %s70 = scalar_select %p67, %s68, %s69
      %p73 = pneg %p67
      %p74 = scmp.eq.s32.totalorder %s11, 7
      %p75 = por %p73, %p74
      %p76 = scmp.ne.s32.totalorder %s68, %s71
      %p77 = scmp.eq.s32.totalorder %s11, 0
      %p78 = por %p76, %p77
      %p79 = scmp.ne.s32.totalorder %s68, %s71
      %p80 = scmp.eq.s32.totalorder %s16, 7
      %p81 = por %p79, %p80
      %p82 = scmp.ne.s32.totalorder %s71, %s72
      %p83 = scmp.eq.s32.totalorder %s16, 0
      %p84 = por %p82, %p83
      %p85 = scmp.ne.s32.totalorder %s71, %s72
      %p86 = scmp.eq.s32.totalorder %s17, 7
      %p87 = por %p85, %p86
      %p89 = scmp.ne.s32.totalorder %s72, %s88
      %p90 = scmp.eq.s32.totalorder %s17, 0
      %p91 = por %p89, %p90
      %p92 = scmp.le.s32.totalorder 1, %s11
      %p93 = scmp.lt.s32.totalorder %s11, 9
      %p94 = pnand %p92, %p93
      %p95 = pneg %p94
      // Predicated region
      $region9: #{tpu_custom_call.1} parent=5 // pred_check
        _
      $region10: #{tpu_custom_call.1} parent=5 // pred_check_branch
        %97 = sbr.rel (%p94) target = $region12
      $region11: #{tpu_custom_call.1} parent=5 // pred_region
        %s98 = ssub.s32 %s11, 1
        // Predicated region
        $region13: #{tpu_custom_call.1} parent=11 // pred_check
          %p99 = pneg %p58
        $region14: #{tpu_custom_call.1} parent=11 // pred_check_branch
          %101 = sbr.rel (%p99) target = $region16
        $region15: #{tpu_custom_call.1} parent=11 // pred_region
          _
        $region16: #{tpu_custom_call.1} parent=11 // pred_fallthru
          _
      $region12: #{tpu_custom_call.1} parent=5 // pred_fallthru
        _
      %p102 = scmp.lt.s32.totalorder %s11, 8
      // Predicated region
      $region17: #{tpu_custom_call.1} parent=5 // pred_check
        %p103 = pneg %p102
      $region18: #{tpu_custom_call.1} parent=5 // pred_check_branch
        %105 = sbr.rel (%p103) target = $region20
      $region19: #{tpu_custom_call.1} parent=5 // pred_region
        // Predicated region
        $region21: #{tpu_custom_call.1} parent=19 // pred_check
          %p106 = pneg %p31
        $region22: #{tpu_custom_call.1} parent=19 // pred_check_branch
          %108 = sbr.rel (%p106) target = $region24
        $region23: #{tpu_custom_call.1} parent=19 // pred_region
          %s109 = smul.u32 2, %s11
          %p110 = scmp.lt.s32.totalorder %s109, 15
          %s111 = scalar_select %p110, %s109, 15
          %s112 = smul.addr %s111, 8
          %s113 = scalar_lea.vmem %s0, %s112
          %s114 = smul.u32 2, %s11
        $region24: #{tpu_custom_call.1} parent=19 // pred_fallthru
          _
      $region20: #{tpu_custom_call.1} parent=5 // pred_fallthru
        _
      %p115 = scmp.le.s32.totalorder 1, %s11
      %p116 = scmp.lt.s32.totalorder %s11, 9
      %p117 = pnand %p115, %p116
      %p118 = pneg %p117
      // Predicated region
      $region25: #{tpu_custom_call.1} parent=5 // pred_check
        _
      $region26: #{tpu_custom_call.1} parent=5 // pred_check_branch
        %120 = sbr.rel (%p117) target = $region28
      $region27: #{tpu_custom_call.1} parent=5 // pred_region
        %s121 = ssub.s32 %s11, 1
        %s122 = smul.u32 2, %s16
        %p123 = scmp.lt.s32.totalorder %s122, 15
        %s124 = scalar_select %p123, %s122, 15
        %s125 = smul.addr %s124, 8
        %s126 = scalar_lea.vmem %s0, %s125
        %p127 = pneg %p37
        %p128 = pneg %p34
        %p129 = pneg %p58
        %p130 = pneg %p55
        %p131 = pneg %p84
        %p132 = pneg %p81
        %s133 = sand.u32 %s71, 1
        %s134 = scalar_lea.sflag [#allocation3], %s133
        %s135 = sand.u32 %s71, 1
        %s136 = smul.addr %s135, 16
        %s137 = scalar_lea.vmem [#allocation2], %s136
        %s138 = smul.u32 2, %s16
        %p139 = scmp.lt.s32.totalorder %s138, 15
        %s140 = scalar_select %p139, %s138, 15
        %s141 = smul.addr %s140, 8
        %s142 = scalar_lea.vmem %s0, %s141
        %s143 = smul.u32 2, %s16
        %s144 = smul.u32 2, %s16
        %v145 = vld [vmem:[%s142] sm:$0xff]
        %v146 = vld [vmem:[%s142 + $0x8] sm:$0xff]
        %v147 = vld [vmem:[%s1] sm:$0xf]
        %vm148 = vcmask 31744
        %v150 = vsel %vm148, %v145, 0
        %v153 = vsel %vm148, %v146, 0
        %vm155 = vcmask 1043456
        %v157 = vsel %vm155, %v147, 0
        %159 = vmatprep.subr.mxu0 0.0
        %v160 = vand.u32 %v157, 4294901760
        %161 = vmatpush1.msra.mxu0 %v160
        %162 = vmatprep.subr.mxu0 0.0
        %163 = vmatpush1.msra.mxu0 0.0
        %164 = vmatprep.subr.mxu0 0.0
        %165 = vmatpush1.msra.mxu0 0.0
        %166 = vmatprep.subr.mxu0 0.0
        %167 = vmatpush1.msra.mxu0 0.0
        %168 = vmatprep.subr.mxu0 0.0
        %169 = vmatpush1.msra.mxu0 0.0
        %170 = vmatprep.subr.mxu0 0.0
        %171 = vmatpush1.msra.mxu0 0.0
        %172 = vmatprep.subr.mxu0 0.0
        %173 = vmatpush1.msra.mxu0 0.0
        %174 = vmatprep.subr.mxu0 0.0
        %175 = vmatpush1.msra.mxu0 0.0
        %176 = vmatprep.subr.mxu0 0.0
        %177 = vmatpush1.msra.mxu0 0.0
        %178 = vmatprep.subr.mxu0 0.0
        %179 = vmatpush1.msra.mxu0 0.0
        %180 = vmatprep.subr.mxu0 0.0
        %181 = vmatpush1.msra.mxu0 0.0
        %182 = vmatprep.subr.mxu0 0.0
        %183 = vmatpush1.msra.mxu0 0.0
        %184 = vmatprep.subr.mxu0 0.0
        %185 = vmatpush1.msra.mxu0 0.0
        %186 = vmatprep.subr.mxu0 0.0
        %187 = vmatpush1.msra.mxu0 0.0
        %188 = vmatprep.subr.mxu0 0.0
        %189 = vmatpush1.msra.mxu0 0.0
        %190 = vmatprep.subr.mxu0 0.0
        %191 = vmatpush1.msra.mxu0 0.0
        %192 = vmatprep.subr.mxu0 0.0
        %193 = vmatpush1.msra.mxu0 0.0
        %194 = vmatprep.subr.mxu0 0.0
        %195 = vmatpush1.msra.mxu0 0.0
        %196 = vmatprep.subr.mxu0 0.0
        %197 = vmatpush1.msra.mxu0 0.0
        %198 = vmatprep.subr.mxu0 0.0
        %199 = vmatpush1.msra.mxu0 0.0
        %200 = vmatprep.subr.mxu0 0.0
        %201 = vmatpush1.msra.mxu0 0.0
        %202 = vmatprep.subr.mxu0 0.0
        %203 = vmatpush1.msra.mxu0 0.0
        %204 = vmatprep.subr.mxu0 0.0
        %205 = vmatpush1.msra.mxu0 0.0
        %206 = vmatprep.subr.mxu0 0.0
        %207 = vmatpush1.msra.mxu0 0.0
        %208 = vmatprep.subr.mxu0 0.0
        %209 = vmatpush1.msra.mxu0 0.0
        %210 = vmatprep.subr.mxu0 0.0
        %211 = vmatpush1.msra.mxu0 0.0
        %212 = vmatprep.subr.mxu0 0.0
        %213 = vmatpush1.msra.mxu0 0.0
        %214 = vmatprep.subr.mxu0 0.0
        %215 = vmatpush1.msra.mxu0 0.0
        %216 = vmatprep.subr.mxu0 0.0
        %217 = vmatpush1.msra.mxu0 0.0
        %218 = vmatprep.subr.mxu0 0.0
        %219 = vmatpush1.msra.mxu0 0.0
        %220 = vmatprep.subr.mxu0 0.0
        %221 = vmatpush1.msra.mxu0 0.0
        %222 = vmatprep.subr.mxu0 0.0
        %223 = vmatpush1.msra.mxu0 0.0
        %224 = vmatprep.mubr.f32.mxu0 0.0
        %v225 = vand.u32 %v150, 4294901760
        %v226 = vsub.f32 %v150, %v225
        %v227 = vand.u32 %v226, 4294901760
        %v228 = vsub.f32 %v226, %v227
        %v229 = vand.u32 %v228, 4294901760
        %230 = vmatmul.mubr.f32.gmra.mrb[0].mxu0 %v229
        %v231 = vpop.f32.mrb[0].mxu0
        %v232 = vadd.f32 0.0, %v231
        %v233 = vpop.f32.mrb[0].mxu0
        %234 = vmatprep.mubr.f32.mxu0 0.0
        %v235 = vand.u32 %v153, 4294901760
        %v236 = vsub.f32 %v153, %v235
        %v237 = vand.u32 %v236, 4294901760
        %v238 = vsub.f32 %v236, %v237
        %v239 = vand.u32 %v238, 4294901760
        %240 = vmatmul.mubr.f32.gmra.mrb[0].mxu0 %v239
        %v241 = vpop.f32.mrb[0].mxu0
        %v242 = vadd.f32 0.0, %v241
        %v243 = vpop.f32.mrb[0].mxu0
        %244 = vdwg.mxu0
        %245 = vmatprep.subr.mxu0 0.0
        %v246 = vand.u32 %v157, 4294901760
        %v247 = vsub.f32 %v157, %v246
        %v248 = vand.u32 %v247, 4294901760
        %v249 = vsub.f32 %v247, %v248
        %v250 = vand.u32 %v249, 4294901760
        %251 = vmatpush1.msra.mxu0 %v250
        %252 = vmatprep.subr.mxu0 0.0
        %253 = vmatpush1.msra.mxu0 0.0
        %254 = vmatprep.subr.mxu0 0.0
        %255 = vmatpush1.msra.mxu0 0.0
        %256 = vmatprep.subr.mxu0 0.0
        %257 = vmatpush1.msra.mxu0 0.0
        %258 = vmatprep.subr.mxu0 0.0
        %259 = vmatpush1.msra.mxu0 0.0
        %260 = vmatprep.subr.mxu0 0.0
        %261 = vmatpush1.msra.mxu0 0.0
        %262 = vmatprep.subr.mxu0 0.0
        %263 = vmatpush1.msra.mxu0 0.0
        %264 = vmatprep.subr.mxu0 0.0
        %265 = vmatpush1.msra.mxu0 0.0
        %266 = vmatprep.subr.mxu0 0.0
        %267 = vmatpush1.msra.mxu0 0.0
        %268 = vmatprep.subr.mxu0 0.0
        %269 = vmatpush1.msra.mxu0 0.0
        %270 = vmatprep.subr.mxu0 0.0
        %271 = vmatpush1.msra.mxu0 0.0
        %272 = vmatprep.subr.mxu0 0.0
        %273 = vmatpush1.msra.mxu0 0.0
        %274 = vmatprep.subr.mxu0 0.0
        %275 = vmatpush1.msra.mxu0 0.0
        %276 = vmatprep.subr.mxu0 0.0
        %277 = vmatpush1.msra.mxu0 0.0
        %278 = vmatprep.subr.mxu0 0.0
        %279 = vmatpush1.msra.mxu0 0.0
        %280 = vmatprep.subr.mxu0 0.0
        %281 = vmatpush1.msra.mxu0 0.0
        %282 = vmatprep.subr.mxu0 0.0
        %283 = vmatpush1.msra.mxu0 0.0
        %284 = vmatprep.subr.mxu0 0.0
        %285 = vmatpush1.msra.mxu0 0.0
        %286 = vmatprep.subr.mxu0 0.0
        %287 = vmatpush1.msra.mxu0 0.0
        %288 = vmatprep.subr.mxu0 0.0
        %289 = vmatpush1.msra.mxu0 0.0
        %290 = vmatprep.subr.mxu0 0.0
        %291 = vmatpush1.msra.mxu0 0.0
        %292 = vmatprep.subr.mxu0 0.0
        %293 = vmatpush1.msra.mxu0 0.0
        %294 = vmatprep.subr.mxu0 0.0
        %295 = vmatpush1.msra.mxu0 0.0
        %296 = vmatprep.subr.mxu0 0.0
        %297 = vmatpush1.msra.mxu0 0.0
        %298 = vmatprep.subr.mxu0 0.0
        %299 = vmatpush1.msra.mxu0 0.0
        %300 = vmatprep.subr.mxu0 0.0
        %301 = vmatpush1.msra.mxu0 0.0
        %302 = vmatprep.subr.mxu0 0.0
        %303 = vmatpush1.msra.mxu0 0.0
        %304 = vmatprep.subr.mxu0 0.0
        %305 = vmatpush1.msra.mxu0 0.0
        %306 = vmatprep.subr.mxu0 0.0
        %307 = vmatpush1.msra.mxu0 0.0
        %308 = vmatprep.subr.mxu0 0.0
        %309 = vmatpush1.msra.mxu0 0.0
        %310 = vmatprep.subr.mxu0 0.0
        %311 = vmatpush1.msra.mxu0 0.0
        %312 = vmatprep.subr.mxu0 0.0
        %313 = vmatpush1.msra.mxu0 0.0
        %314 = vmatprep.mubr.f32.mxu0 0.0
        %v315 = vand.u32 %v150, 4294901760
        %316 = vmatmul.mubr.f32.gmra.mrb[0].mxu0 %v315
        %v317 = vpop.f32.mrb[0].mxu0
        %v318 = vadd.f32 %v232, %v317
        %v319 = vpop.f32.mrb[0].mxu0
        %320 = vmatprep.mubr.f32.mxu0 0.0
        %v321 = vand.u32 %v153, 4294901760
        %322 = vmatmul.mubr.f32.gmra.mrb[0].mxu0 %v321
        %v323 = vpop.f32.mrb[0].mxu0
        %v324 = vadd.f32 %v242, %v323
        %v325 = vpop.f32.mrb[0].mxu0
        %326 = vdwg.mxu0
        %327 = vmatprep.subr.mxu0 0.0
        %v328 = vand.u32 %v157, 4294901760
        %v329 = vsub.f32 %v157, %v328
        %330 = vmatpush1.msra.mxu0 %v329
        %331 = vmatprep.subr.mxu0 0.0
        %332 = vmatpush1.msra.mxu0 0.0
        %333 = vmatprep.subr.mxu0 0.0
        %334 = vmatpush1.msra.mxu0 0.0
        %335 = vmatprep.subr.mxu0 0.0
        %336 = vmatpush1.msra.mxu0 0.0
        %337 = vmatprep.subr.mxu0 0.0
        %338 = vmatpush1.msra.mxu0 0.0
        %339 = vmatprep.subr.mxu0 0.0
        %340 = vmatpush1.msra.mxu0 0.0
        %341 = vmatprep.subr.mxu0 0.0
        %342 = vmatpush1.msra.mxu0 0.0
        %343 = vmatprep.subr.mxu0 0.0
        %344 = vmatpush1.msra.mxu0 0.0
        %345 = vmatprep.subr.mxu0 0.0
        %346 = vmatpush1.msra.mxu0 0.0
        %347 = vmatprep.subr.mxu0 0.0
        %348 = vmatpush1.msra.mxu0 0.0
        %349 = vmatprep.subr.mxu0 0.0
        %350 = vmatpush1.msra.mxu0 0.0
        %351 = vmatprep.subr.mxu0 0.0
        %352 = vmatpush1.msra.mxu0 0.0
        %353 = vmatprep.subr.mxu0 0.0
        %354 = vmatpush1.msra.mxu0 0.0
        %355 = vmatprep.subr.mxu0 0.0
        %356 = vmatpush1.msra.mxu0 0.0
        %357 = vmatprep.subr.mxu0 0.0
        %358 = vmatpush1.msra.mxu0 0.0
        %359 = vmatprep.subr.mxu0 0.0
        %360 = vmatpush1.msra.mxu0 0.0
        %361 = vmatprep.subr.mxu0 0.0
        %362 = vmatpush1.msra.mxu0 0.0
        %363 = vmatprep.subr.mxu0 0.0
        %364 = vmatpush1.msra.mxu0 0.0
        %365 = vmatprep.subr.mxu0 0.0
        %366 = vmatpush1.msra.mxu0 0.0
        %367 = vmatprep.subr.mxu0 0.0
        %368 = vmatpush1.msra.mxu0 0.0
        %369 = vmatprep.subr.mxu0 0.0
        %370 = vmatpush1.msra.mxu0 0.0
        %371 = vmatprep.subr.mxu0 0.0
        %372 = vmatpush1.msra.mxu0 0.0
        %373 = vmatprep.subr.mxu0 0.0
        %374 = vmatpush1.msra.mxu0 0.0
        %375 = vmatprep.subr.mxu0 0.0
        %376 = vmatpush1.msra.mxu0 0.0
        %377 = vmatprep.subr.mxu0 0.0
        %378 = vmatpush1.msra.mxu0 0.0
        %379 = vmatprep.subr.mxu0 0.0
        %380 = vmatpush1.msra.mxu0 0.0
        %381 = vmatprep.subr.mxu0 0.0
        %382 = vmatpush1.msra.mxu0 0.0
        %383 = vmatprep.subr.mxu0 0.0
        %384 = vmatpush1.msra.mxu0 0.0
        %385 = vmatprep.subr.mxu0 0.0
        %386 = vmatpush1.msra.mxu0 0.0
        %387 = vmatprep.subr.mxu0 0.0
        %388 = vmatpush1.msra.mxu0 0.0
        %389 = vmatprep.subr.mxu0 0.0
        %390 = vmatpush1.msra.mxu0 0.0
        %391 = vmatprep.subr.mxu0 0.0
        %392 = vmatpush1.msra.mxu0 0.0
        %393 = vmatprep.mubr.f32.mxu0 0.0
        %v394 = vand.u32 %v150, 4294901760
        %v395 = vsub.f32 %v150, %v394
        %396 = vmatmul.mubr.f32.gmra.mrb[0].mxu0 %v395
        %v397 = vpop.f32.mrb[0].mxu0
        %v398 = vadd.f32 %v318, %v397
        %v399 = vpop.f32.mrb[0].mxu0
        %400 = vmatprep.mubr.f32.mxu0 0.0
        %v401 = vand.u32 %v153, 4294901760
        %v402 = vsub.f32 %v153, %v401
        %403 = vmatmul.mubr.f32.gmra.mrb[0].mxu0 %v402
        %v404 = vpop.f32.mrb[0].mxu0
        %v405 = vadd.f32 %v324, %v404
        %v406 = vpop.f32.mrb[0].mxu0
        %407 = vdwg.mxu0
        %408 = vmatprep.subr.mxu0 0.0
        %v409 = vand.u32 %v157, 4294901760
        %410 = vmatpush1.msra.mxu0 %v409
        %411 = vmatprep.subr.mxu0 0.0
        %412 = vmatpush1.msra.mxu0 0.0
        %413 = vmatprep.subr.mxu0 0.0
        %414 = vmatpush1.msra.mxu0 0.0
        %415 = vmatprep.subr.mxu0 0.0
        %416 = vmatpush1.msra.mxu0 0.0
        %417 = vmatprep.subr.mxu0 0.0
        %418 = vmatpush1.msra.mxu0 0.0
        %419 = vmatprep.subr.mxu0 0.0
        %420 = vmatpush1.msra.mxu0 0.0
        %421 = vmatprep.subr.mxu0 0.0
        %422 = vmatpush1.msra.mxu0 0.0
        %423 = vmatprep.subr.mxu0 0.0
        %424 = vmatpush1.msra.mxu0 0.0
        %425 = vmatprep.subr.mxu0 0.0
        %426 = vmatpush1.msra.mxu0 0.0
        %427 = vmatprep.subr.mxu0 0.0
        %428 = vmatpush1.msra.mxu0 0.0
        %429 = vmatprep.subr.mxu0 0.0
        %430 = vmatpush1.msra.mxu0 0.0
        %431 = vmatprep.subr.mxu0 0.0
        %432 = vmatpush1.msra.mxu0 0.0
        %433 = vmatprep.subr.mxu0 0.0
        %434 = vmatpush1.msra.mxu0 0.0
        %435 = vmatprep.subr.mxu0 0.0
        %436 = vmatpush1.msra.mxu0 0.0
        %437 = vmatprep.subr.mxu0 0.0
        %438 = vmatpush1.msra.mxu0 0.0
        %439 = vmatprep.subr.mxu0 0.0
        %440 = vmatpush1.msra.mxu0 0.0
        %441 = vmatprep.subr.mxu0 0.0
        %442 = vmatpush1.msra.mxu0 0.0
        %443 = vmatprep.subr.mxu0 0.0
        %444 = vmatpush1.msra.mxu0 0.0
        %445 = vmatprep.subr.mxu0 0.0
        %446 = vmatpush1.msra.mxu0 0.0
        %447 = vmatprep.subr.mxu0 0.0
        %448 = vmatpush1.msra.mxu0 0.0
        %449 = vmatprep.subr.mxu0 0.0
        %450 = vmatpush1.msra.mxu0 0.0
        %451 = vmatprep.subr.mxu0 0.0
        %452 = vmatpush1.msra.mxu0 0.0
        %453 = vmatprep.subr.mxu0 0.0
        %454 = vmatpush1.msra.mxu0 0.0
        %455 = vmatprep.subr.mxu0 0.0
        %456 = vmatpush1.msra.mxu0 0.0
        %457 = vmatprep.subr.mxu0 0.0
        %458 = vmatpush1.msra.mxu0 0.0
        %459 = vmatprep.subr.mxu0 0.0
        %460 = vmatpush1.msra.mxu0 0.0
        %461 = vmatprep.subr.mxu0 0.0
        %462 = vmatpush1.msra.mxu0 0.0
        %463 = vmatprep.subr.mxu0 0.0
        %464 = vmatpush1.msra.mxu0 0.0
        %465 = vmatprep.subr.mxu0 0.0
        %466 = vmatpush1.msra.mxu0 0.0
        %467 = vmatprep.subr.mxu0 0.0
        %468 = vmatpush1.msra.mxu0 0.0
        %469 = vmatprep.subr.mxu0 0.0
        %470 = vmatpush1.msra.mxu0 0.0
        %471 = vmatprep.subr.mxu0 0.0
        %472 = vmatpush1.msra.mxu0 0.0
        %473 = vmatprep.mubr.f32.mxu0 0.0
        %v474 = vand.u32 %v150, 4294901760
        %v475 = vsub.f32 %v150, %v474
        %v476 = vand.u32 %v475, 4294901760
        %477 = vmatmul.mubr.f32.gmra.mrb[0].mxu0 %v476
        %v478 = vpop.f32.mrb[0].mxu0
        %v479 = vadd.f32 %v398, %v478
        %v480 = vpop.f32.mrb[0].mxu0
        %481 = vmatprep.mubr.f32.mxu0 0.0
        %v482 = vand.u32 %v153, 4294901760
        %v483 = vsub.f32 %v153, %v482
        %v484 = vand.u32 %v483, 4294901760
        %485 = vmatmul.mubr.f32.gmra.mrb[0].mxu0 %v484
        %v486 = vpop.f32.mrb[0].mxu0
        %v487 = vadd.f32 %v405, %v486
        %v488 = vpop.f32.mrb[0].mxu0
        %489 = vdwg.mxu0
        %490 = vmatprep.subr.mxu0 0.0
        %v491 = vand.u32 %v157, 4294901760
        %v492 = vsub.f32 %v157, %v491
        %v493 = vand.u32 %v492, 4294901760
        %494 = vmatpush1.msra.mxu0 %v493
        %495 = vmatprep.subr.mxu0 0.0
        %496 = vmatpush1.msra.mxu0 0.0
        %497 = vmatprep.subr.mxu0 0.0
        %498 = vmatpush1.msra.mxu0 0.0
        %499 = vmatprep.subr.mxu0 0.0
        %500 = vmatpush1.msra.mxu0 0.0
        %501 = vmatprep.subr.mxu0 0.0
        %502 = vmatpush1.msra.mxu0 0.0
        %503 = vmatprep.subr.mxu0 0.0
        %504 = vmatpush1.msra.mxu0 0.0
        %505 = vmatprep.subr.mxu0 0.0
        %506 = vmatpush1.msra.mxu0 0.0
        %507 = vmatprep.subr.mxu0 0.0
        %508 = vmatpush1.msra.mxu0 0.0
        %509 = vmatprep.subr.mxu0 0.0
        %510 = vmatpush1.msra.mxu0 0.0
        %511 = vmatprep.subr.mxu0 0.0
        %512 = vmatpush1.msra.mxu0 0.0
        %513 = vmatprep.subr.mxu0 0.0
        %514 = vmatpush1.msra.mxu0 0.0
        %515 = vmatprep.subr.mxu0 0.0
        %516 = vmatpush1.msra.mxu0 0.0
        %517 = vmatprep.subr.mxu0 0.0
        %518 = vmatpush1.msra.mxu0 0.0
        %519 = vmatprep.subr.mxu0 0.0
        %520 = vmatpush1.msra.mxu0 0.0
        %521 = vmatprep.subr.mxu0 0.0
        %522 = vmatpush1.msra.mxu0 0.0
        %523 = vmatprep.subr.mxu0 0.0
        %524 = vmatpush1.msra.mxu0 0.0
        %525 = vmatprep.subr.mxu0 0.0
        %526 = vmatpush1.msra.mxu0 0.0
        %527 = vmatprep.subr.mxu0 0.0
        %528 = vmatpush1.msra.mxu0 0.0
        %529 = vmatprep.subr.mxu0 0.0
        %530 = vmatpush1.msra.mxu0 0.0
        %531 = vmatprep.subr.mxu0 0.0
        %532 = vmatpush1.msra.mxu0 0.0
        %533 = vmatprep.subr.mxu0 0.0
        %534 = vmatpush1.msra.mxu0 0.0
        %535 = vmatprep.subr.mxu0 0.0
        %536 = vmatpush1.msra.mxu0 0.0
        %537 = vmatprep.subr.mxu0 0.0
        %538 = vmatpush1.msra.mxu0 0.0
        %539 = vmatprep.subr.mxu0 0.0
        %540 = vmatpush1.msra.mxu0 0.0
        %541 = vmatprep.subr.mxu0 0.0
        %542 = vmatpush1.msra.mxu0 0.0
        %543 = vmatprep.subr.mxu0 0.0
        %544 = vmatpush1.msra.mxu0 0.0
        %545 = vmatprep.subr.mxu0 0.0
        %546 = vmatpush1.msra.mxu0 0.0
        %547 = vmatprep.subr.mxu0 0.0
        %548 = vmatpush1.msra.mxu0 0.0
        %549 = vmatprep.subr.mxu0 0.0
        %550 = vmatpush1.msra.mxu0 0.0
        %551 = vmatprep.subr.mxu0 0.0
        %552 = vmatpush1.msra.mxu0 0.0
        %553 = vmatprep.subr.mxu0 0.0
        %554 = vmatpush1.msra.mxu0 0.0
        %555 = vmatprep.subr.mxu0 0.0
        %556 = vmatpush1.msra.mxu0 0.0
        %557 = vmatprep.mubr.f32.mxu0 0.0
        %v558 = vand.u32 %v150, 4294901760
        %559 = vmatmul.mubr.f32.gmra.mrb[0].mxu0 %v558
        %v560 = vpop.f32.mrb[0].mxu0
        %v561 = vadd.f32 %v479, %v560
        %v562 = vpop.f32.mrb[0].mxu0
        %563 = vmatprep.mubr.f32.mxu0 0.0
        %v564 = vand.u32 %v153, 4294901760
        %565 = vmatmul.mubr.f32.gmra.mrb[0].mxu0 %v564
        %v566 = vpop.f32.mrb[0].mxu0
        %v567 = vadd.f32 %v487, %v566
        %v568 = vpop.f32.mrb[0].mxu0
        %569 = vdwg.mxu0
        %570 = vmatprep.subr.mxu0 0.0
        %v571 = vand.u32 %v157, 4294901760
        %572 = vmatpush1.msra.mxu0 %v571
        %573 = vmatprep.subr.mxu0 0.0
        %574 = vmatpush1.msra.mxu0 0.0
        %575 = vmatprep.subr.mxu0 0.0
        %576 = vmatpush1.msra.mxu0 0.0
        %577 = vmatprep.subr.mxu0 0.0
        %578 = vmatpush1.msra.mxu0 0.0
        %579 = vmatprep.subr.mxu0 0.0
        %580 = vmatpush1.msra.mxu0 0.0
        %581 = vmatprep.subr.mxu0 0.0
        %582 = vmatpush1.msra.mxu0 0.0
        %583 = vmatprep.subr.mxu0 0.0
        %584 = vmatpush1.msra.mxu0 0.0
        %585 = vmatprep.subr.mxu0 0.0
        %586 = vmatpush1.msra.mxu0 0.0
        %587 = vmatprep.subr.mxu0 0.0
        %588 = vmatpush1.msra.mxu0 0.0
        %589 = vmatprep.subr.mxu0 0.0
        %590 = vmatpush1.msra.mxu0 0.0
        %591 = vmatprep.subr.mxu0 0.0
        %592 = vmatpush1.msra.mxu0 0.0
        %593 = vmatprep.subr.mxu0 0.0
        %594 = vmatpush1.msra.mxu0 0.0
        %595 = vmatprep.subr.mxu0 0.0
        %596 = vmatpush1.msra.mxu0 0.0
        %597 = vmatprep.subr.mxu0 0.0
        %598 = vmatpush1.msra.mxu0 0.0
        %599 = vmatprep.subr.mxu0 0.0
        %600 = vmatpush1.msra.mxu0 0.0
        %601 = vmatprep.subr.mxu0 0.0
        %602 = vmatpush1.msra.mxu0 0.0
        %603 = vmatprep.subr.mxu0 0.0
        %604 = vmatpush1.msra.mxu0 0.0
        %605 = vmatprep.subr.mxu0 0.0
        %606 = vmatpush1.msra.mxu0 0.0
        %607 = vmatprep.subr.mxu0 0.0
        %608 = vmatpush1.msra.mxu0 0.0
        %609 = vmatprep.subr.mxu0 0.0
        %610 = vmatpush1.msra.mxu0 0.0
        %611 = vmatprep.subr.mxu0 0.0
        %612 = vmatpush1.msra.mxu0 0.0
        %613 = vmatprep.subr.mxu0 0.0
        %614 = vmatpush1.msra.mxu0 0.0
        %615 = vmatprep.subr.mxu0 0.0
        %616 = vmatpush1.msra.mxu0 0.0
        %617 = vmatprep.subr.mxu0 0.0
        %618 = vmatpush1.msra.mxu0 0.0
        %619 = vmatprep.subr.mxu0 0.0
        %620 = vmatpush1.msra.mxu0 0.0
        %621 = vmatprep.subr.mxu0 0.0
        %622 = vmatpush1.msra.mxu0 0.0
        %623 = vmatprep.subr.mxu0 0.0
        %624 = vmatpush1.msra.mxu0 0.0
        %625 = vmatprep.subr.mxu0 0.0
        %626 = vmatpush1.msra.mxu0 0.0
        %627 = vmatprep.subr.mxu0 0.0
        %628 = vmatpush1.msra.mxu0 0.0
        %629 = vmatprep.subr.mxu0 0.0
        %630 = vmatpush1.msra.mxu0 0.0
        %631 = vmatprep.subr.mxu0 0.0
        %632 = vmatpush1.msra.mxu0 0.0
        %633 = vmatprep.subr.mxu0 0.0
        %634 = vmatpush1.msra.mxu0 0.0
        %635 = vmatprep.mubr.f32.mxu0 0.0
        %v636 = vand.u32 %v150, 4294901760
        %637 = vmatmul.mubr.f32.gmra.mrb[0].mxu0 %v636
        %v638 = vpop.f32.mrb[0].mxu0
        %v639 = vadd.f32 %v561, %v638
        %v640 = vpop.f32.mrb[0].mxu0
        %641 = vmatprep.mubr.f32.mxu0 0.0
        %v642 = vand.u32 %v153, 4294901760
        %643 = vmatmul.mubr.f32.gmra.mrb[0].mxu0 %v642
        %v644 = vpop.f32.mrb[0].mxu0
        %v645 = vadd.f32 %v567, %v644
        %v646 = vpop.f32.mrb[0].mxu0
        %647 = vdwg.mxu0
        %v648 = vand.u32 2147483647, %v639
        %vm649 = vcmp.le.f32.partialorder %v648, 0.7853982
        %vm650 = vcmp.lt.s32.totalorder %v639, 0
        %v651 = vand.u32 %v639, 2139095040
        %v652 = vshrl.u32 %v651, 23
        %v653 = vsub.s32 %v652, 127
        %v654 = vand.u32 2147483647, %v639
        %v655 = vand.u32 %v654, 8388607
        %v656 = vor.u32 %v655, 8388608
        %v657 = vsub.s32 0, %v656
        %v658 = vadd.s32 %v653, 1
        %vm659 = vcmp.gt.s32.totalorder %v658, 0
        %v660 = vsel %vm659, %v658, 0
        %v661 = vshrl.u32 %v660, 5
        %v662 = vand.u32 %v660, 31
        %v663 = vsub.s32 32, %v662
        %v664 = vshrl.u32 683565275, %v663
        %v665 = vshll.u32 683565275, %v662
        %v666 = vshrl.u32 2475754826, %v663
        %v667 = vor.u32 %v665, %v666
        %v668 = vshll.u32 2475754826, %v662
        %v669 = vshrl.u32 2131351028, %v663
        %v670 = vor.u32 %v668, %v669
        %v671 = vshll.u32 2131351028, %v662
        %v672 = vshrl.u32 2102212464, %v663
        %v673 = vor.u32 %v671, %v672
        %v674 = vshll.u32 2102212464, %v662
        %v675 = vshrl.u32 920167782, %v663
        %v676 = vor.u32 %v674, %v675
        %v677 = vshll.u32 920167782, %v662
        %v678 = vshrl.u32 1326507024, %v663
        %v679 = vor.u32 %v677, %v678
        %vm680 = vcmp.lt.s32.totalorder %v661, 1
        %vm681 = vcmp.lt.s32.totalorder %v661, 2
        %vm682 = vcmp.lt.s32.totalorder %v661, 3
        %vm683 = vcmp.lt.s32.totalorder %v661, 4
        %v684 = vsel %vm680, %v664, %v667
        %v685 = vsel %vm683, %v673, 2102212464
        %v686 = vsel %vm682, %v670, %v685
        %v687 = vsel %vm681, %v684, %v686
        %v688 = vsel %vm680, %v667, %v670
        %v689 = vsel %vm683, %v676, 920167782
        %v690 = vsel %vm682, %v673, %v689
        %v691 = vsel %vm681, %v688, %v690
        %v692 = vsel %vm680, %v670, %v673
        %v693 = vsel %vm683, %v679, 1326507024
        %v694 = vsel %vm682, %v676, %v693
        %v695 = vsel %vm681, %v692, %v694
        %v696 = vshll.u32 %v656, 8
        %v697 = vmul.u32.u64.compose %v696, %v695
        %v698 = vextract.low.u32 %v697
        %v699 = vextract.high.u32 %v697
        %v700 = vmul.u32.u64.compose %v696, %v691
        %v701 = vextract.low.u32 %v700
        %v702 = vextract.high.u32 %v700
        %v703 = vmul.u32 %v696, %v687
        %v704 = vadd.s32 %v699, %v701
        %vm705 = vc.u32 %v699, %v701
        %v706 = vadd.s32 %v702, 1
        %v707 = vsel %vm705, %v706, %v702
        %v708 = vadd.s32 %v703, %v707
        %v709 = vadd.s32 %v708, 536870912
        %v710 = vshrl.u32 %v709, 30
        %v711 = vshll.u32 %v710, 30
        %v712 = vsub.s32 %v708, %v711
        %vm713 = vcmp.lt.s32.totalorder %v712, 0
        %v714 = vsub.s32 0, %v712
        %v715 = vsel %vm713, %v714, %v712
        %v716 = vclz %v715
        %v717 = vsub.s32 %v716, 2
        %vm718 = vcmp.gt.s32.totalorder 0, %v717
        %v719 = vsel %vm718, 0, %v717
        %v720 = vsub.s32 32, %v719
        %v721 = vshll.u32 %v712, %v719
        %v722 = vshrl.u32 %v704, %v720
        %v723 = vor.u32 %v721, %v722
        %v724 = vsub.s32 4294967266, %v719
        %v725 = vadd.s32 %v724, 127
        %v726 = vshll.u32 %v725, 23
        %v727 = vor.u32 4788187, %v726
        %v728 = vand.u32 2147483647, %v727
        %v730 = vcvt.s32.f32 %v723
        %v731 = vmul.f32 %v730, %v728
        %v732 = vxor.u32 %v731, 2147483648
        %v733 = vsel %vm650, %v732, %v731
        %v734 = vsub.s32 4, %v710
        %v735 = vsel %vm650, %v734, %v710
        %v736 = vsel %vm649, %v639, %v733
        %v737 = vsel %vm649, 0, %v735
        %v738 = vcosq.f32.pop %v736
        %v739 = vsinq.f32.pop %v736
        %vm740 = vweird.f32 %v639
        %v741 = vadd.s32 %v737, 3
        %v742 = vand.u32 %v741, 3
        %vm743 = vcmp.lt.s32.totalorder %v742, 2
        %vm744 = vcmp.eq.s32.totalorder %v742, 0
        %v745 = vxor.u32 %v739, 2147483648
        %v746 = vsel %vm744, %v738, %v745
        %vm747 = vcmp.eq.s32.totalorder %v742, 2
        %v748 = vxor.u32 %v738, 2147483648
        %v749 = vsel %vm747, %v748, %v739
        %v750 = vsel %vm743, %v746, %v749
        %v751 = vsel %vm740, nan, %v750
        %v752 = vand.u32 2147483647, %v645
        %vm753 = vcmp.le.f32.partialorder %v752, 0.7853982
        %vm754 = vcmp.lt.s32.totalorder %v645, 0
        %v755 = vand.u32 %v645, 2139095040
        %v756 = vshrl.u32 %v755, 23
        %v757 = vsub.s32 %v756, 127
        %v758 = vand.u32 2147483647, %v645
        %v759 = vand.u32 %v758, 8388607
        %v760 = vor.u32 %v759, 8388608
        %v761 = vsub.s32 0, %v760
        %v762 = vadd.s32 %v757, 1
        %vm763 = vcmp.gt.s32.totalorder %v762, 0
        %v764 = vsel %vm763, %v762, 0
        %v765 = vshrl.u32 %v764, 5
        %v766 = vand.u32 %v764, 31
        %v767 = vsub.s32 32, %v766
        %v768 = vshrl.u32 683565275, %v767
        %v769 = vshll.u32 683565275, %v766
        %v770 = vshrl.u32 2475754826, %v767
        %v771 = vor.u32 %v769, %v770
        %v772 = vshll.u32 2475754826, %v766
        %v773 = vshrl.u32 2131351028, %v767
        %v774 = vor.u32 %v772, %v773
        %v775 = vshll.u32 2131351028, %v766
        %v776 = vshrl.u32 2102212464, %v767
        %v777 = vor.u32 %v775, %v776
        %v778 = vshll.u32 2102212464, %v766
        %v779 = vshrl.u32 920167782, %v767
        %v780 = vor.u32 %v778, %v779
        %v781 = vshll.u32 920167782, %v766
        %v782 = vshrl.u32 1326507024, %v767
        %v783 = vor.u32 %v781, %v782
        %vm784 = vcmp.lt.s32.totalorder %v765, 1
        %vm785 = vcmp.lt.s32.totalorder %v765, 2
        %vm786 = vcmp.lt.s32.totalorder %v765, 3
        %vm787 = vcmp.lt.s32.totalorder %v765, 4
        %v788 = vsel %vm784, %v768, %v771
        %v789 = vsel %vm787, %v777, 2102212464
        %v790 = vsel %vm786, %v774, %v789
        %v791 = vsel %vm785, %v788, %v790
        %v792 = vsel %vm784, %v771, %v774
        %v793 = vsel %vm787, %v780, 920167782
        %v794 = vsel %vm786, %v777, %v793
        %v795 = vsel %vm785, %v792, %v794
        %v796 = vsel %vm784, %v774, %v777
        %v797 = vsel %vm787, %v783, 1326507024
        %v798 = vsel %vm786, %v780, %v797
        %v799 = vsel %vm785, %v796, %v798
        %v800 = vshll.u32 %v760, 8
        %v801 = vmul.u32.u64.compose %v800, %v799
        %v802 = vextract.low.u32 %v801
        %v803 = vextract.high.u32 %v801
        %v804 = vmul.u32.u64.compose %v800, %v795
        %v805 = vextract.low.u32 %v804
        %v806 = vextract.high.u32 %v804
        %v807 = vmul.u32 %v800, %v791
        %v808 = vadd.s32 %v803, %v805
        %vm809 = vc.u32 %v803, %v805
        %v810 = vadd.s32 %v806, 1
        %v811 = vsel %vm809, %v810, %v806
        %v812 = vadd.s32 %v807, %v811
        %v813 = vadd.s32 %v812, 536870912
        %v814 = vshrl.u32 %v813, 30
        %v815 = vshll.u32 %v814, 30
        %v816 = vsub.s32 %v812, %v815
        %vm817 = vcmp.lt.s32.totalorder %v816, 0
        %v818 = vsub.s32 0, %v816
        %v819 = vsel %vm817, %v818, %v816
        %v820 = vclz %v819
        %v821 = vsub.s32 %v820, 2
        %vm822 = vcmp.gt.s32.totalorder 0, %v821
        %v823 = vsel %vm822, 0, %v821
        %v824 = vsub.s32 32, %v823
        %v825 = vshll.u32 %v816, %v823
        %v826 = vshrl.u32 %v808, %v824
        %v827 = vor.u32 %v825, %v826
        %v828 = vsub.s32 4294967266, %v823
        %v829 = vadd.s32 %v828, 127
        %v830 = vshll.u32 %v829, 23
        %v831 = vor.u32 4788187, %v830
        %v832 = vand.u32 2147483647, %v831
        %v834 = vcvt.s32.f32 %v827
        %v835 = vmul.f32 %v834, %v832
        %v836 = vxor.u32 %v835, 2147483648
        %v837 = vsel %vm754, %v836, %v835
        %v838 = vsub.s32 4, %v814
        %v839 = vsel %vm754, %v838, %v814
        %v840 = vsel %vm753, %v645, %v837
        %v841 = vsel %vm753, 0, %v839
        %v842 = vcosq.f32.pop %v840
        %v843 = vsinq.f32.pop %v840
        %vm844 = vweird.f32 %v645
        %v845 = vadd.s32 %v841, 3
        %v846 = vand.u32 %v845, 3
        %vm847 = vcmp.lt.s32.totalorder %v846, 2
        %vm848 = vcmp.eq.s32.totalorder %v846, 0
        %v849 = vxor.u32 %v843, 2147483648
        %v850 = vsel %vm848, %v842, %v849
        %vm851 = vcmp.eq.s32.totalorder %v846, 2
        %v852 = vxor.u32 %v842, 2147483648
        %v853 = vsel %vm851, %v852, %v843
        %v854 = vsel %vm847, %v850, %v853
        %v855 = vsel %vm844, nan, %v854
        %856 = vst [vmem:[%s137] sm:$0xff] %v751
        %857 = vst [vmem:[%s137 + $0x8] sm:$0xff] %v855
        %s858 = sand.u32 %s71, 1
        %s859 = scalar_lea.sflag [#allocation3], %s858
        %s860 = sand.u32 %s71, 1
        %s861 = smul.addr %s860, 16
        %s862 = scalar_lea.vmem [#allocation2], %s861
        // Predicated region
        $region29: #{tpu_custom_call.1} parent=27 // pred_check
          %p863 = pneg %p81
        $region30: #{tpu_custom_call.1} parent=27 // pred_check_branch
          %865 = sbr.rel (%p863) target = $region32
        $region31: #{tpu_custom_call.1} parent=27 // pred_region
          %s866 = smul.u32 2, %s16
          %s868 = ssub.s32 256, 256
          %869 = vsyncadd %s859, %s868
          %s870 = smul.addr %s866, 128
          %s871 = scalar_lea.hbm %s2, %s870
          %s872 = sshll.u32 %s862, 4
          %s873 = int_to_ptr.vmem [resolvable:$true] %s872
          %878 = dma.vmem_to_hbm [thread:$0]  %s873, 256, %s871, %s859, 128, 128, 8
        $region32: #{tpu_custom_call.1} parent=27 // pred_fallthru
          _
      $region28: #{tpu_custom_call.1} parent=5 // pred_fallthru
        _
      %p879 = scmp.le.s32.totalorder 2, %s11
      // Predicated region
      $region33: #{tpu_custom_call.1} parent=5 // pred_check
        %p880 = pneg %p879
      $region34: #{tpu_custom_call.1} parent=5 // pred_check_branch
        %882 = sbr.rel (%p880) target = $region36
      $region35: #{tpu_custom_call.1} parent=5 // pred_region
        %s883 = ssub.s32 %s11, 2
        // Predicated region
        $region37: #{tpu_custom_call.1} parent=35 // pred_check
          %p884 = pneg %p87
        $region38: #{tpu_custom_call.1} parent=35 // pred_check_branch
          %886 = sbr.rel (%p884) target = $region40
        $region39: #{tpu_custom_call.1} parent=35 // pred_region
          %s887 = sand.u32 %s72, 1
          %s888 = scalar_lea.sflag [#allocation3], %s887
          %s889 = sand.u32 %s72, 1
          %s890 = smul.addr %s889, 16
          %s891 = scalar_lea.vmem [#allocation2], %s890
          %892 = dma.done %s888, 256
        $region40: #{tpu_custom_call.1} parent=35 // pred_fallthru
          _
      $region36: #{tpu_custom_call.1} parent=5 // pred_fallthru
        _
    $region6: #{tpu_custom_call.1} parent=1 // loop_footer
      %s15 = sadd.s32 1, %s11
    $region7: #{tpu_custom_call.1} parent=1 // loop_footer_branch
      %10 = sbr.rel target = $region3
    $region8: #{tpu_custom_call.1} parent=1 // loop_exit
      _
    %893 = vsyncpa [#allocation3], 1
    %s894 = scalar_lea.sflag [#allocation3], 1
    %895 = vsyncpa %s894, 1

</llo_original>
